<compile_context>
chip_gen: v5e
topology: v5e:2x2
jax: 0.10.0
libtpu: 0.0.40
codegen_flags: <defaults>
</compile_context>

<pallas_src>
import functools

import jax
import jax.numpy as jnp
from jax.experimental import pallas as pl
from jax.experimental.pallas import tpu as pltpu

F_PAD = 128        # lane-dense feature padding (last dim -> 128 lanes)
SUBLANE = 16       # bf16 packed sublane tile is (16, 128): pad node axis to 16

_VMEM = pl.BlockSpec(memory_space=pltpu.MemorySpace.VMEM)


def _round_up(n, m):
    return ((n + m - 1) // m) * m


def _pad2(a, rows, cols, dtype):
    out = jnp.zeros((rows, cols), dtype)
    return out.at[: a.shape[0], : a.shape[1]].set(a.astype(dtype))


# ---------------------------------------------------------------------------
# Fused Pallas kernel: all GCN layers + output linear + masked softmax
# ---------------------------------------------------------------------------
def fused_gnn_kernel(a_ref, x_ref, cw_ref, cb_ref, ow_ref, ob_ref, o_ref,
                     *, num_layers, valid_out):
    a = a_ref[...]                                    # (N_pad, N_pad) bf16
    h = x_ref[...].astype(jnp.float32)                # running features, f32

    # Stacked GCN layers: h <- A_hat @ (h @ W_l) + b_l   (f32 accumulation,
    # bf16 MXU operands, h never round-trips through a scratch ref).
    for l in range(num_layers):                       # tiny static trip count
        xw = jnp.dot(h.astype(jnp.bfloat16), cw_ref[l],
                     preferred_element_type=jnp.float32)
        agg = jnp.dot(a, xw.astype(jnp.bfloat16),
                      preferred_element_type=jnp.float32)
        h = agg + cb_ref[l]

    # Output head: softmax(h @ W_o + b_o) over the valid (unpadded) lanes only.
    logits = jnp.dot(h.astype(jnp.bfloat16), ow_ref[...],
                     preferred_element_type=jnp.float32) + ob_ref[...]
    col = jax.lax.broadcasted_iota(jnp.int32, logits.shape, 1)
    valid = col < valid_out
    logits = jnp.where(valid, logits, jnp.finfo(jnp.float32).min)
    m = jnp.max(logits, axis=-1, keepdims=True)
    e = jnp.where(valid, jnp.exp(logits - m), 0.0)    # padded lanes exactly 0
    denom = jnp.sum(e, axis=-1, keepdims=True)
    o_ref[...] = e / denom                            # exact normalization


# ---------------------------------------------------------------------------
# Wrapper: single pallas_call on lane-dense padded operands
# ---------------------------------------------------------------------------
@functools.partial(jax.jit, static_argnames=("output_dim",))
def gnn_forward_fused(a_pad, x, cw, cb, ow, ob, *, output_dim):
    num_nodes = x.shape[0]
    n_pad = a_pad.shape[0]
    x_p = _pad2(x, n_pad, F_PAD, jnp.bfloat16)
    num_layers = cw.shape[0]

    flops = (2 * n_pad * F_PAD * F_PAD * (num_layers + 1)       # h @ W, head
             + 2 * n_pad * n_pad * F_PAD * num_layers)           # A_hat @ XW
    bytes_accessed = (a_pad.size * 2 + x_p.size * 2 + cw.size * 2
                      + cb.size * 4 + ow.size * 2 + ob.size * 4
                      + n_pad * F_PAD * 4)
    vmem_bytes = int(min(64 * 1024 * 1024,
                         max(4 * bytes_accessed, 16 * 1024 * 1024)))

    kernel = functools.partial(
        fused_gnn_kernel, num_layers=num_layers, valid_out=output_dim)
    out = pl.pallas_call(
        kernel,
        out_shape=jax.ShapeDtypeStruct((n_pad, F_PAD), jnp.float32),
        in_specs=[_VMEM] * 6,
        out_specs=_VMEM,
        cost_estimate=pl.CostEstimate(
            flops=flops,
            transcendentals=n_pad * F_PAD,
            bytes_accessed=bytes_accessed),
        compiler_params=pltpu.CompilerParams(vmem_limit_bytes=vmem_bytes),
    )(a_pad, x_p, cw, cb, ow, ob)
    return out[:num_nodes, :output_dim]


# ---------------------------------------------------------------------------
# Hoisted / cacheable setup (done once per graph, not per forward call)
# ---------------------------------------------------------------------------
def gcn_norm_adj(edge_index, num_nodes):
    """Dense D^{-1/2}(A + I)D^{-1/2} with add-based edge aggregation."""
    src, dst = edge_index[0], edge_index[1]
    a = jnp.zeros((num_nodes, num_nodes), jnp.float32)
    a = a.at[dst, src].add(1.0)                            # multigraph-safe (add)
    diag = jnp.diagonal(a)
    a = a + jnp.diag(jnp.where(diag > 0.0, 0.0, 1.0))      # add only missing self-loops
    deg = jnp.sum(a, axis=1)
    d_inv_sqrt = jnp.where(deg > 0.0, jax.lax.rsqrt(deg), 0.0)
    return d_inv_sqrt[:, None] * a * d_inv_sqrt[None, :]


def prepare_adjacency(edge_index, num_nodes):
    """Normalized adjacency, already padded to 16-sublane rows and cast to bf16."""
    a_hat = gcn_norm_adj(edge_index, num_nodes)
    n_pad = _round_up(num_nodes, SUBLANE)
    return a_hat, _pad2(a_hat, n_pad, n_pad, jnp.bfloat16)


def pack_params(conv_params, out_params):
    """Stack + zero-pad all layer params into lane-dense, VMEM-resident buffers."""
    num_layers = len(conv_params)
    cw = jnp.zeros((num_layers, F_PAD, F_PAD), jnp.bfloat16)
    cb = jnp.zeros((num_layers, 1, F_PAD), jnp.float32)
    for l, (w, b) in enumerate(conv_params):
        cw = cw.at[l, : w.shape[0], : w.shape[1]].set(w.astype(jnp.bfloat16))
        cb = cb.at[l, 0, : b.shape[0]].set(b.astype(jnp.float32))
    w_o, b_o = out_params
    ow = _pad2(w_o, F_PAD, F_PAD, jnp.bfloat16)
    ob = jnp.zeros((1, F_PAD), jnp.float32).at[0, : b_o.shape[0]].set(b_o)
    return cw, cb, ow, ob


# ---------------------------------------------------------------------------
# Parameter init (matches the stacked-GCN + Linear+Softmax module structure)
# ---------------------------------------------------------------------------
def init_params(key, input_dim, hidden_dim, output_dim, num_layers):
    if num_layers == 1:
        hidden_dim = output_dim
    dims = [input_dim] + [hidden_dim] * num_layers
    conv_params = []
    for i in range(num_layers):
        key, k1, k2 = jax.random.split(key, 3)
        f_in, f_out = dims[i], dims[i + 1]
        w = jax.random.normal(k1, (f_in, f_out), jnp.float32) * (1.0 / jnp.sqrt(f_in))
        b = jax.random.normal(k2, (f_out,), jnp.float32) * 0.01
        conv_params.append((w, b))
    key, k1, k2 = jax.random.split(key, 3)
    w_o = jax.random.normal(k1, (dims[-1], output_dim), jnp.float32) * (1.0 / jnp.sqrt(dims[-1]))
    b_o = jax.random.normal(k2, (output_dim,), jnp.float32) * 0.01
    return conv_params, (w_o, b_o)


# Pure-JAX reference (f32) for correctness checking.
def gnn_reference(a_hat, x, conv_params, out_params):
    h = x
    for w, b in conv_params:
        h = a_hat @ (h @ w) + b
    w_o, b_o = out_params
    return jax.nn.softmax(h @ w_o + b_o, axis=-1)


if __name__ == "__main__":
    key = jax.random.PRNGKey(0)

    N = 32            # number of graph nodes
    input_dim = 16
    hidden_dim = 32
    output_dim = 8
    num_layers = 2    # conv_layer='GCN', num_layers=2

    # node features
    key, kx = jax.random.split(key)
    x = jax.random.normal(kx, (N, input_dim), jnp.float32)

    # undirected ring graph, both edge directions present
    src = jnp.arange(N, dtype=jnp.int32)
    dst = (src + 1) % N
    edge_index = jnp.stack(
        [jnp.concatenate([src, dst]), jnp.concatenate([dst, src])], axis=0
    )  # (2, 2N)

    conv_params, out_params = init_params(key, input_dim, hidden_dim, output_dim, num_layers)

    # Hoisted / cacheable setup: padded bf16 adjacency + packed params.
    a_hat, a_pad = prepare_adjacency(edge_index, N)
    cw, cb, ow, ob = pack_params(conv_params, out_params)

    out = gnn_forward_fused(a_pad, x, cw, cb, ow, ob, output_dim=output_dim)
    out = jax.block_until_ready(out)

    assert out.shape == (N, output_dim)
    # softmax rows sum to 1 (exact division inside the kernel)
    assert bool(jnp.allclose(jnp.sum(out, axis=-1), 1.0, atol=1e-3))
    # matches f32 reference to bf16-matmul tolerance
    ref = gnn_reference(a_hat, x, conv_params, out_params)
    assert bool(jnp.allclose(out, ref, atol=5e-2)), float(jnp.max(jnp.abs(out - ref)))
    print("KERNEL_OK")
</pallas_src>

<mosaic_0001>
module attributes {stable_mosaic.version = 11 : i64} {
  func.func @fused_gnn_kernel(%arg0: memref<32x32xbf16, #tpu.memory_space<vmem>>, %arg1: memref<32x128xbf16, #tpu.memory_space<vmem>>, %arg2: memref<2x128x128xbf16, #tpu.memory_space<vmem>>, %arg3: memref<2x1x128xf32, #tpu.memory_space<vmem>>, %arg4: memref<128x128xbf16, #tpu.memory_space<vmem>>, %arg5: memref<1x128xf32, #tpu.memory_space<vmem>>, %arg6: memref<32x128xf32, #tpu.memory_space<vmem>>) attributes {dimension_semantics = [], scalar_prefetch = 0 : i64, scratch_operands = 0 : i64, tpu.core_type = #tpu.core_type<tc>} {
    %c0 = arith.constant 0 : index
    %c0_0 = arith.constant 0 : index
    %0 = vector.load %arg0[%c0, %c0_0] : memref<32x32xbf16, #tpu.memory_space<vmem>>, vector<32x32xbf16>
    %c0_1 = arith.constant 0 : index
    %c0_2 = arith.constant 0 : index
    %1 = vector.load %arg1[%c0_1, %c0_2] : memref<32x128xbf16, #tpu.memory_space<vmem>>, vector<32x128xbf16>
    %2 = arith.extf %1 : vector<32x128xbf16> to vector<32x128xf32>
    %3 = arith.truncf %2 : vector<32x128xf32> to vector<32x128xbf16>
    %c0_3 = arith.constant 0 : index
    %c0_4 = arith.constant 0 : index
    %c0_5 = arith.constant 0 : index
    %4 = vector.load %arg2[%c0_3, %c0_4, %c0_5] : memref<2x128x128xbf16, #tpu.memory_space<vmem>>, vector<1x128x128xbf16>
    %5 = vector.shape_cast %4 : vector<1x128x128xbf16> to vector<128x128xbf16>
    %cst = arith.constant dense<0.000000e+00> : vector<32x128xf32>
    %6 = tpu.matmul %3, %5, %cst {dimension_numbers = #tpu.dot_dimension_numbers<[1], [0], [0], [1], [0, 0, 1, 1], [], []>} : vector<32x128xbf16>, vector<128x128xbf16>, vector<32x128xf32> -> vector<32x128xf32>
    %7 = arith.truncf %6 : vector<32x128xf32> to vector<32x128xbf16>
    %cst_6 = arith.constant dense<0.000000e+00> : vector<32x128xf32>
    %8 = tpu.matmul %0, %7, %cst_6 {dimension_numbers = #tpu.dot_dimension_numbers<[1], [0], [0], [1], [0, 0, 1, 1], [], []>} : vector<32x32xbf16>, vector<32x128xbf16>, vector<32x128xf32> -> vector<32x128xf32>
    %c0_7 = arith.constant 0 : index
    %c0_8 = arith.constant 0 : index
    %c0_9 = arith.constant 0 : index
    %9 = vector.load %arg3[%c0_7, %c0_8, %c0_9] : memref<2x1x128xf32, #tpu.memory_space<vmem>>, vector<1x1x128xf32>
    %10 = vector.shape_cast %9 : vector<1x1x128xf32> to vector<1x128xf32>
    %11 = vector.broadcast %10 : vector<1x128xf32> to vector<32x128xf32>
    %12 = arith.addf %8, %11 : vector<32x128xf32>
    %13 = arith.truncf %12 : vector<32x128xf32> to vector<32x128xbf16>
    %c1 = arith.constant 1 : index
    %c0_10 = arith.constant 0 : index
    %c0_11 = arith.constant 0 : index
    %14 = vector.load %arg2[%c1, %c0_10, %c0_11] : memref<2x128x128xbf16, #tpu.memory_space<vmem>>, vector<1x128x128xbf16>
    %15 = vector.shape_cast %14 : vector<1x128x128xbf16> to vector<128x128xbf16>
    %cst_12 = arith.constant dense<0.000000e+00> : vector<32x128xf32>
    %16 = tpu.matmul %13, %15, %cst_12 {dimension_numbers = #tpu.dot_dimension_numbers<[1], [0], [0], [1], [0, 0, 1, 1], [], []>} : vector<32x128xbf16>, vector<128x128xbf16>, vector<32x128xf32> -> vector<32x128xf32>
    %17 = arith.truncf %16 : vector<32x128xf32> to vector<32x128xbf16>
    %cst_13 = arith.constant dense<0.000000e+00> : vector<32x128xf32>
    %18 = tpu.matmul %0, %17, %cst_13 {dimension_numbers = #tpu.dot_dimension_numbers<[1], [0], [0], [1], [0, 0, 1, 1], [], []>} : vector<32x32xbf16>, vector<32x128xbf16>, vector<32x128xf32> -> vector<32x128xf32>
    %c1_14 = arith.constant 1 : index
    %c0_15 = arith.constant 0 : index
    %c0_16 = arith.constant 0 : index
    %19 = vector.load %arg3[%c1_14, %c0_15, %c0_16] : memref<2x1x128xf32, #tpu.memory_space<vmem>>, vector<1x1x128xf32>
    %20 = vector.shape_cast %19 : vector<1x1x128xf32> to vector<1x128xf32>
    %21 = vector.broadcast %20 : vector<1x128xf32> to vector<32x128xf32>
    %22 = arith.addf %18, %21 : vector<32x128xf32>
    %23 = arith.truncf %22 : vector<32x128xf32> to vector<32x128xbf16>
    %c0_17 = arith.constant 0 : index
    %c0_18 = arith.constant 0 : index
    %24 = vector.load %arg4[%c0_17, %c0_18] : memref<128x128xbf16, #tpu.memory_space<vmem>>, vector<128x128xbf16>
    %cst_19 = arith.constant dense<0.000000e+00> : vector<32x128xf32>
    %25 = tpu.matmul %23, %24, %cst_19 {dimension_numbers = #tpu.dot_dimension_numbers<[1], [0], [0], [1], [0, 0, 1, 1], [], []>} : vector<32x128xbf16>, vector<128x128xbf16>, vector<32x128xf32> -> vector<32x128xf32>
    %c0_20 = arith.constant 0 : index
    %c0_21 = arith.constant 0 : index
    %26 = vector.load %arg5[%c0_20, %c0_21] : memref<1x128xf32, #tpu.memory_space<vmem>>, vector<1x128xf32>
    %27 = vector.broadcast %26 : vector<1x128xf32> to vector<32x128xf32>
    %28 = arith.addf %25, %27 : vector<32x128xf32>
    %29 = tpu.iota {dimensions = array<i32: 1>} : vector<32x128xi32>
    %c8_i32 = arith.constant 8 : i32
    %30 = vector.broadcast %c8_i32 : i32 to vector<32x128xi32>
    %31 = arith.cmpi slt, %29, %30 : vector<32x128xi32>
    %cst_22 = arith.constant -3.40282347E+38 : f32
    %32 = vector.broadcast %cst_22 : f32 to vector<32x128xf32>
    %33 = arith.select %31, %28, %32 : vector<32x128xi1>, vector<32x128xf32>
    %cst_23 = arith.constant dense<0xFF800000> : vector<32xf32>
    %34 = vector.multi_reduction <maximumf>, %33, %cst_23 [1] : vector<32x128xf32> to vector<32xf32>
    %35 = vector.shape_cast %34 : vector<32xf32> to vector<32x1xf32>
    %36 = vector.broadcast %35 : vector<32x1xf32> to vector<32x128xf32>
    %37 = arith.subf %33, %36 : vector<32x128xf32>
    %38 = math.exp %37 : vector<32x128xf32>
    %cst_24 = arith.constant 0.000000e+00 : f32
    %39 = vector.broadcast %cst_24 : f32 to vector<32x128xf32>
    %40 = arith.select %31, %38, %39 : vector<32x128xi1>, vector<32x128xf32>
    %cst_25 = arith.constant dense<0.000000e+00> : vector<32xf32>
    %41 = vector.multi_reduction <add>, %40, %cst_25 [1] : vector<32x128xf32> to vector<32xf32>
    %42 = vector.shape_cast %41 : vector<32xf32> to vector<32x1xf32>
    %43 = vector.broadcast %42 : vector<32x1xf32> to vector<32x128xf32>
    %44 = arith.divf %40, %43 : vector<32x128xf32>
    %c0_26 = arith.constant 0 : index
    %c0_27 = arith.constant 0 : index
    %45 = vector.load %arg6[%c0_26, %c0_27] : memref<32x128xf32, #tpu.memory_space<vmem>>, vector<32x128xf32>
    tpu.vector_store %arg6[%c0_26, %c0_27], %44 {strides = array<i32>} : memref<32x128xf32, #tpu.memory_space<vmem>>, vector<32x128xf32>,
    return
  }
}

</mosaic_0001>

<llo_original>
// kernel: gnn_forward_fused.1
$region0: #{gnn_forward_fused.1}
  #allocation0 [shape = 'u32[]', space=smem, size = 0x4, offset = 0x4, fixed_abs, tag = 'smem constant byte address 0x4 - core index']
  #allocation1 [shape = 'u32[72,128]{1,0:T(1,128)}', space=vmem, size = 0x9000, scoped, tag = 'internal scratch']
  %s0 = inlined_call_operand.vmem [shape: bf16[32,32], index: 0, kind: input, shape index: {}]
  %s1 = inlined_call_operand.vmem [shape: bf16[32,128], index: 1, kind: input, shape index: {}]
  %s2 = inlined_call_operand.hbm [shape: bf16[2,128,128], index: 2, kind: input, shape index: {}]
  %s3 = inlined_call_operand.vmem [shape: f32[2,1,128], index: 3, kind: input, shape index: {}]
  %s4 = inlined_call_operand.vmem [shape: bf16[128,128], index: 4, kind: input, shape index: {}]
  %s5 = inlined_call_operand.vmem [shape: f32[1,128], index: 5, kind: input, shape index: {}]
  %s6 = inlined_call_operand.vmem [shape: f32[32,128], index: 6, kind: output, shape index: {}]
  %s7 = sld [smem:[#allocation0]]
  $region38: #{gnn_forward_fused.1} parent=0
    _
  %s9 = ssub.s32 1, %s7
  %s10 = scalar_select 0, %s9, %s7
  $region1: #{gnn_forward_fused.1} parent=0
    #allocation2 [shape = 'u8[65536]{0}', space=vmem, size = 0x10000, scoped, tag = 'input window, operand 2, single buffered']
    #allocation3 [shape = 's32[1]{0}', space=sflag, size = 0x4, scoped, tag = 'scoped memory for gnn_forward_fused.1']
    %11 = vsyncpa [#allocation3], 0
    // Predicated region
    $region2: #{gnn_forward_fused.1} parent=1 // pred_check
      _
    $region3: #{gnn_forward_fused.1} parent=1 // pred_check_branch
      %13 = sbr.rel (0) target = $region5
    $region4: #{gnn_forward_fused.1} parent=1 // pred_region
      _
    $region5: #{gnn_forward_fused.1} parent=1 // pred_fallthru
      _
    // Predicated region
    $region6: #{gnn_forward_fused.1} parent=1 // pred_check
      _
    $region7: #{gnn_forward_fused.1} parent=1 // pred_check_branch
      %15 = sbr.rel (0) target = $region9
    $region8: #{gnn_forward_fused.1} parent=1 // pred_region
      _
    $region9: #{gnn_forward_fused.1} parent=1 // pred_fallthru
      _
    // Predicated region
    $region10: #{gnn_forward_fused.1} parent=1 // pred_check
      _
    $region11: #{gnn_forward_fused.1} parent=1 // pred_check_branch
      %17 = sbr.rel (0) target = $region13
    $region12: #{gnn_forward_fused.1} parent=1 // pred_region
      %19 = vsyncadd [#allocation3], 0
      %s20 = sshll.u32 %s2, 4
      %s21 = int_to_ptr.hbm [resolvable:$true] %s20
      %s22 = sshll.u32 [#allocation2], 4
      %s23 = int_to_ptr.vmem [resolvable:$true] %s22
      %28 = dma.hbm_to_vmem [thread:$0]  %s21, 2048, %s23, [#allocation3], 64, 64, 4
    $region13: #{gnn_forward_fused.1} parent=1 // pred_fallthru
      _
    // Predicated region
    $region14: #{gnn_forward_fused.1} parent=1 // pred_check
      _
    $region15: #{gnn_forward_fused.1} parent=1 // pred_check_branch
      %30 = sbr.rel (0) target = $region17
    $region16: #{gnn_forward_fused.1} parent=1 // pred_region
      _
    $region17: #{gnn_forward_fused.1} parent=1 // pred_fallthru
      _
    // Predicated region
    $region18: #{gnn_forward_fused.1} parent=1 // pred_check
      _
    $region19: #{gnn_forward_fused.1} parent=1 // pred_check_branch
      %32 = sbr.rel (0) target = $region21
    $region20: #{gnn_forward_fused.1} parent=1 // pred_region
      _
    $region21: #{gnn_forward_fused.1} parent=1 // pred_fallthru
      _
    // Predicated region
    $region22: #{gnn_forward_fused.1} parent=1 // pred_check
      _
    $region23: #{gnn_forward_fused.1} parent=1 // pred_check_branch
      %34 = sbr.rel (0) target = $region25
    $region24: #{gnn_forward_fused.1} parent=1 // pred_region
      _
    $region25: #{gnn_forward_fused.1} parent=1 // pred_fallthru
      _
    // Predicated region
    $region26: #{gnn_forward_fused.1} parent=1 // pred_check
      _
    $region27: #{gnn_forward_fused.1} parent=1 // pred_check_branch
      %36 = sbr.rel (0) target = $region29
    $region28: #{gnn_forward_fused.1} parent=1 // pred_region
      %38 = dma.done [#allocation3], 2048
    $region29: #{gnn_forward_fused.1} parent=1 // pred_fallthru
      _
    %v40 = vld [vmem:[%s0] sm:$0xf]
    %v41 = vld [vmem:[%s0 + $0x4] sm:$0xf]
    %v42 = vld [vmem:[%s0 + $0x8] sm:$0xf]
    %v43 = vld [vmem:[%s0 + $0xc] sm:$0xf]
    %v44 = vld [vmem:[%s1] sm:$0xf]
    %v45 = vld [vmem:[%s1 + $0x4] sm:$0xf]
    %v46 = vld [vmem:[%s1 + $0x8] sm:$0xf]
    %v47 = vld [vmem:[%s1 + $0xc] sm:$0xf]
    %v48 = vld [vmem:[#allocation2] sm:$0xf]
    %v49 = vld [vmem:[#allocation2 + $0x4] sm:$0xf]
    %v50 = vld [vmem:[#allocation2 + $0x8] sm:$0xf]
    %v51 = vld [vmem:[#allocation2 + $0xc] sm:$0xf]
    %v52 = vld [vmem:[#allocation2 + $0x10] sm:$0xf]
    %v53 = vld [vmem:[#allocation2 + $0x14] sm:$0xf]
    %v54 = vld [vmem:[#allocation2 + $0x18] sm:$0xf]
    %v55 = vld [vmem:[#allocation2 + $0x1c] sm:$0xf]
    %v56 = vld [vmem:[#allocation2 + $0x20] sm:$0xf]
    %v57 = vld [vmem:[#allocation2 + $0x24] sm:$0xf]
    %v58 = vld [vmem:[#allocation2 + $0x28] sm:$0xf]
    %v59 = vld [vmem:[#allocation2 + $0x2c] sm:$0xf]
    %v60 = vld [vmem:[#allocation2 + $0x30] sm:$0xf]
    %v61 = vld [vmem:[#allocation2 + $0x34] sm:$0xf]
    %v62 = vld [vmem:[#allocation2 + $0x38] sm:$0xf]
    %v63 = vld [vmem:[#allocation2 + $0x3c] sm:$0xf]
    %v68 = vunpack.c.l.b16 %v44
    %v69 = vunpack.c.l.b16 %v45
    %v70 = vunpack.c.l.b16 %v46
    %v71 = vunpack.c.l.b16 %v47
    %v72 = vpack.c.b16 %v69, %v68
    %v73 = vpack.c.b16 %v71, %v70
    %v92 = vunpack.c.l.b16 %v48
    %v93 = vunpack.c.l.b16 %v49
    %v94 = vunpack.c.l.b16 %v50
    %v95 = vunpack.c.l.b16 %v51
    %v96 = vunpack.c.l.b16 %v52
    %v97 = vunpack.c.l.b16 %v53
    %v98 = vunpack.c.l.b16 %v54
    %v99 = vunpack.c.l.b16 %v55
    %v100 = vunpack.c.l.b16 %v56
    %v101 = vunpack.c.l.b16 %v57
    %v102 = vunpack.c.l.b16 %v58
    %v103 = vunpack.c.l.b16 %v59
    %v104 = vunpack.c.l.b16 %v60
    %v105 = vunpack.c.l.b16 %v61
    %v106 = vunpack.c.l.b16 %v62
    %v107 = vunpack.c.l.b16 %v63
    %v108 = vpack.c.b16 %v93, %v92
    %v109 = vpack.c.b16 %v95, %v94
    %v110 = vpack.c.b16 %v97, %v96
    %v111 = vpack.c.b16 %v99, %v98
    %v112 = vpack.c.b16 %v101, %v100
    %v113 = vpack.c.b16 %v103, %v102
    %v114 = vpack.c.b16 %v105, %v104
    %v115 = vpack.c.b16 %v107, %v106
    %124 = vmatpush.bf16.msra.mxu0 %v115
    %125 = vmatpush.bf16.msra.mxu0 %v114
    %126 = vmatpush.bf16.msra.mxu0 %v113
    %127 = vmatpush.bf16.msra.mxu0 %v112
    %128 = vmatpush.bf16.msra.mxu0 %v111
    %129 = vmatpush.bf16.msra.mxu0 %v110
    %130 = vmatpush.bf16.msra.mxu0 %v109
    %131 = vmatpush.bf16.msra.mxu0 %v108
    %132 = vmatmul.bf16.gmra.mxu0 %v72
    %v133 = vpop.f32.mrf.mxu0
    %v134 = vadd.f32 0.0, %v133
    %v135 = vpop.f32.mrf.mxu0
    %v136 = vadd.f32 0.0, %v135
    %137 = vmatmul.bf16.gmra.mxu0 %v73
    %v138 = vpop.f32.mrf.mxu0
    %v139 = vadd.f32 0.0, %v138
    %v140 = vpop.f32.mrf.mxu0
    %v141 = vadd.f32 0.0, %v140
    %142 = vdwg.mxu0
    %v143 = vpack.c.bf16 %v136, %v134
    %v144 = vpack.c.bf16 %v141, %v139
    %v145 = vld [vmem:[%s3] sm:$0x1]
    %v147 = vperm.slane %v145, 0
    %v153 = vunpack.c.l.b16 %v40
    %v154 = vunpack.c.l.b16 %v41
    %v155 = vunpack.c.l.b16 %v42
    %v156 = vunpack.c.l.b16 %v43
    %v157 = vpack.c.b16 %v154, %v153
    %v158 = vpack.c.b16 %v156, %v155
    %vm159 = vcmask 261120
    %v161 = vsel %vm159, %v157, 0
    %v164 = vsel %vm159, %v158, 0
    %166 = vmatpush.bf16.msra.mxu0 0
    %167 = vmatpush.bf16.msra.mxu0 0
    %168 = vmatpush.bf16.msra.mxu0 0
    %169 = vmatpush.bf16.msra.mxu0 0
    %170 = vmatpush.bf16.msra.mxu0 0
    %171 = vmatpush.bf16.msra.mxu0 0
    %172 = vmatpush.bf16.msra.mxu0 %v144
    %173 = vmatpush.bf16.msra.mxu0 %v143
    %174 = vmatmul.bf16.gmra.mxu0 %v161
    %v175 = vpop.f32.mrf.mxu0
    %v176 = vadd.f32 %v147, %v175
    %v177 = vpop.f32.mrf.mxu0
    %v178 = vadd.f32 %v147, %v177
    %179 = vmatmul.bf16.gmra.mxu0 %v164
    %v180 = vpop.f32.mrf.mxu0
    %v181 = vadd.f32 %v147, %v180
    %v182 = vpop.f32.mrf.mxu0
    %v183 = vadd.f32 %v147, %v182
    %184 = vdwg.mxu0
    %v185 = vpack.c.bf16 %v178, %v176
    %v186 = vpack.c.bf16 %v183, %v181
    %s187 = scalar_lea.vmem [#allocation2], 64
    %v188 = vld [vmem:[%s187] sm:$0xf]
    %v189 = vld [vmem:[%s187 + $0x4] sm:$0xf]
    %v190 = vld [vmem:[%s187 + $0x8] sm:$0xf]
    %v191 = vld [vmem:[%s187 + $0xc] sm:$0xf]
    %v192 = vld [vmem:[%s187 + $0x10] sm:$0xf]
    %v193 = vld [vmem:[%s187 + $0x14] sm:$0xf]
    %v194 = vld [vmem:[%s187 + $0x18] sm:$0xf]
    %v195 = vld [vmem:[%s187 + $0x1c] sm:$0xf]
    %v196 = vld [vmem:[%s187 + $0x20] sm:$0xf]
    %v197 = vld [vmem:[%s187 + $0x24] sm:$0xf]
    %v198 = vld [vmem:[%s187 + $0x28] sm:$0xf]
    %v199 = vld [vmem:[%s187 + $0x2c] sm:$0xf]
    %v200 = vld [vmem:[%s187 + $0x30] sm:$0xf]
    %v201 = vld [vmem:[%s187 + $0x34] sm:$0xf]
    %v202 = vld [vmem:[%s187 + $0x38] sm:$0xf]
    %v203 = vld [vmem:[%s187 + $0x3c] sm:$0xf]
    %v220 = vunpack.c.l.b16 %v188
    %v221 = vunpack.c.l.b16 %v189
    %v222 = vunpack.c.l.b16 %v190
    %v223 = vunpack.c.l.b16 %v191
    %v224 = vunpack.c.l.b16 %v192
    %v225 = vunpack.c.l.b16 %v193
    %v226 = vunpack.c.l.b16 %v194
    %v227 = vunpack.c.l.b16 %v195
    %v228 = vunpack.c.l.b16 %v196
    %v229 = vunpack.c.l.b16 %v197
    %v230 = vunpack.c.l.b16 %v198
    %v231 = vunpack.c.l.b16 %v199
    %v232 = vunpack.c.l.b16 %v200
    %v233 = vunpack.c.l.b16 %v201
    %v234 = vunpack.c.l.b16 %v202
    %v235 = vunpack.c.l.b16 %v203
    %v236 = vpack.c.b16 %v221, %v220
    %v237 = vpack.c.b16 %v223, %v222
    %v238 = vpack.c.b16 %v225, %v224
    %v239 = vpack.c.b16 %v227, %v226
    %v240 = vpack.c.b16 %v229, %v228
    %v241 = vpack.c.b16 %v231, %v230
    %v242 = vpack.c.b16 %v233, %v232
    %v243 = vpack.c.b16 %v235, %v234
    %252 = vmatpush.bf16.msra.mxu0 %v243
    %253 = vmatpush.bf16.msra.mxu0 %v242
    %254 = vmatpush.bf16.msra.mxu0 %v241
    %255 = vmatpush.bf16.msra.mxu0 %v240
    %256 = vmatpush.bf16.msra.mxu0 %v239
    %257 = vmatpush.bf16.msra.mxu0 %v238
    %258 = vmatpush.bf16.msra.mxu0 %v237
    %259 = vmatpush.bf16.msra.mxu0 %v236
    %260 = vmatmul.bf16.gmra.mxu0 %v185
    %v261 = vpop.f32.mrf.mxu0
    %v262 = vadd.f32 0.0, %v261
    %v263 = vpop.f32.mrf.mxu0
    %v264 = vadd.f32 0.0, %v263
    %265 = vmatmul.bf16.gmra.mxu0 %v186
    %v266 = vpop.f32.mrf.mxu0
    %v267 = vadd.f32 0.0, %v266
    %v268 = vpop.f32.mrf.mxu0
    %v269 = vadd.f32 0.0, %v268
    %270 = vdwg.mxu0
    %v271 = vpack.c.bf16 %v264, %v262
    %v272 = vpack.c.bf16 %v269, %v267
    %s273 = scalar_lea.vmem %s3, 1
    %v274 = vld [vmem:[%s273] sm:$0x1]
    %v276 = vperm.slane %v274, 0
    %278 = vmatpush.bf16.msra.mxu0 0
    %279 = vmatpush.bf16.msra.mxu0 0
    %280 = vmatpush.bf16.msra.mxu0 0
    %281 = vmatpush.bf16.msra.mxu0 0
    %282 = vmatpush.bf16.msra.mxu0 0
    %283 = vmatpush.bf16.msra.mxu0 0
    %284 = vmatpush.bf16.msra.mxu0 %v272
    %285 = vmatpush.bf16.msra.mxu0 %v271
    %286 = vmatmul.bf16.gmra.mxu0 %v161
    %v287 = vpop.f32.mrf.mxu0
    %v288 = vadd.f32 %v276, %v287
    %v289 = vpop.f32.mrf.mxu0
    %v290 = vadd.f32 %v276, %v289
    %291 = vmatmul.bf16.gmra.mxu0 %v164
    %v292 = vpop.f32.mrf.mxu0
    %v293 = vadd.f32 %v276, %v292
    %v294 = vpop.f32.mrf.mxu0
    %v295 = vadd.f32 %v276, %v294
    %296 = vdwg.mxu0
    %v297 = vpack.c.bf16 %v290, %v288
    %v298 = vpack.c.bf16 %v295, %v293
    %v299 = vld [vmem:[%s4] sm:$0xf]
    %v300 = vld [vmem:[%s4 + $0x4] sm:$0xf]
    %v301 = vld [vmem:[%s4 + $0x8] sm:$0xf]
    %v302 = vld [vmem:[%s4 + $0xc] sm:$0xf]
    %v303 = vld [vmem:[%s4 + $0x10] sm:$0xf]
    %v304 = vld [vmem:[%s4 + $0x14] sm:$0xf]
    %v305 = vld [vmem:[%s4 + $0x18] sm:$0xf]
    %v306 = vld [vmem:[%s4 + $0x1c] sm:$0xf]
    %v307 = vld [vmem:[%s4 + $0x20] sm:$0xf]
    %v308 = vld [vmem:[%s4 + $0x24] sm:$0xf]
    %v309 = vld [vmem:[%s4 + $0x28] sm:$0xf]
    %v310 = vld [vmem:[%s4 + $0x2c] sm:$0xf]
    %v311 = vld [vmem:[%s4 + $0x30] sm:$0xf]
    %v312 = vld [vmem:[%s4 + $0x34] sm:$0xf]
    %v313 = vld [vmem:[%s4 + $0x38] sm:$0xf]
    %v314 = vld [vmem:[%s4 + $0x3c] sm:$0xf]
    %v315 = vld [vmem:[%s5] sm:$0x1]
    %v317 = vperm.slane %v315, 0
    %v335 = vunpack.c.l.b16 %v299
    %v336 = vunpack.c.l.b16 %v300
    %v337 = vunpack.c.l.b16 %v301
    %v338 = vunpack.c.l.b16 %v302
    %v339 = vunpack.c.l.b16 %v303
    %v340 = vunpack.c.l.b16 %v304
    %v341 = vunpack.c.l.b16 %v305
    %v342 = vunpack.c.l.b16 %v306
    %v343 = vunpack.c.l.b16 %v307
    %v344 = vunpack.c.l.b16 %v308
    %v345 = vunpack.c.l.b16 %v309
    %v346 = vunpack.c.l.b16 %v310
    %v347 = vunpack.c.l.b16 %v311
    %v348 = vunpack.c.l.b16 %v312
    %v349 = vunpack.c.l.b16 %v313
    %v350 = vunpack.c.l.b16 %v314
    %v351 = vpack.c.b16 %v336, %v335
    %v352 = vpack.c.b16 %v338, %v337
    %v353 = vpack.c.b16 %v340, %v339
    %v354 = vpack.c.b16 %v342, %v341
    %v355 = vpack.c.b16 %v344, %v343
    %v356 = vpack.c.b16 %v346, %v345
    %v357 = vpack.c.b16 %v348, %v347
    %v358 = vpack.c.b16 %v350, %v349
    %367 = vmatpush.bf16.msra.mxu0 %v358
    %368 = vmatpush.bf16.msra.mxu0 %v357
    %369 = vmatpush.bf16.msra.mxu0 %v356
    %370 = vmatpush.bf16.msra.mxu0 %v355
    %371 = vmatpush.bf16.msra.mxu0 %v354
    %372 = vmatpush.bf16.msra.mxu0 %v353
    %373 = vmatpush.bf16.msra.mxu0 %v352
    %374 = vmatpush.bf16.msra.mxu0 %v351
    %375 = vmatmul.bf16.gmra.mxu0 %v297
    %v376 = vpop.f32.mrf.mxu0
    %v377 = vadd.f32 %v317, %v376
    %v378 = vpop.f32.mrf.mxu0
    %v379 = vadd.f32 %v317, %v378
    %380 = vmatmul.bf16.gmra.mxu0 %v298
    %v381 = vpop.f32.mrf.mxu0
    %v382 = vadd.f32 %v317, %v381
    %v383 = vpop.f32.mrf.mxu0
    %v384 = vadd.f32 %v317, %v383
    %385 = vdwg.mxu0
    %v386 = vlaneseq
    %v387 = vand.u32 %v386, 127
    %vm388 = vcmp.lt.s32.totalorder %v387, 8
    %v389 = vsel %vm388, %v377, -3.4028235e+38
    %v390 = vsel %vm388, %v379, -3.4028235e+38
    %v391 = vsel %vm388, %v382, -3.4028235e+38
    %v392 = vsel %vm388, %v384, -3.4028235e+38
    %393 = vmax.xlane.f32.xlu0 %v389
    %v394 = vpop.xlane.xlu0 %393
    %395 = vmax.xlane.f32.xlu0 %v390
    %v396 = vpop.xlane.xlu0 %395
    %397 = vmax.xlane.f32.xlu0 %v391
    %v398 = vpop.xlane.xlu0 %397
    %399 = vmax.xlane.f32.xlu0 %v392
    %v400 = vpop.xlane.xlu0 %399
    %v401 = vsub.f32 %v389, %v394
    %v402 = vsub.f32 %v390, %v396
    %v403 = vsub.f32 %v391, %v398
    %v404 = vsub.f32 %v392, %v400
    %v405 = vmul.f32 %v401, 1.442695
    %v406 = vpow.pop %v405
    %v407 = vmul.f32 %v402, 1.442695
    %v408 = vpow.pop %v407
    %v409 = vmul.f32 %v403, 1.442695
    %v410 = vpow.pop %v409
    %v411 = vmul.f32 %v404, 1.442695
    %v412 = vpow.pop %v411
    %v413 = vsel %vm388, %v406, 0.0
    %v414 = vsel %vm388, %v408, 0.0
    %v415 = vsel %vm388, %v410, 0.0
    %v416 = vsel %vm388, %v412, 0.0
    %417 = vadd.xlane.f32.xlu0 %v413
    %v418 = vpop.xlane.xlu0 %417
    %419 = vadd.xlane.f32.xlu0 %v414
    %v420 = vpop.xlane.xlu0 %419
    %421 = vadd.xlane.f32.xlu0 %v415
    %v422 = vpop.xlane.xlu0 %421
    %423 = vadd.xlane.f32.xlu0 %v416
    %v424 = vpop.xlane.xlu0 %423
    %v425 = vrcp.pop %v418
    %v426 = vmul.f32 %v418, %v425
    %v427 = vsub.f32 1.0, %v426
    %v428 = vmul.f32 %v425, %v427
    %v429 = vadd.f32 %v425, %v428
    %vm430 = vweird.f32 %v418
    %vm431 = vweird.f32 %v425
    %vm432 = vmor %vm430, %vm431
    %v433 = vsel %vm432, %v425, %v429
    %v434 = vand.u32 2147483647, %v418
    %vm435 = vcmp.eq.f32.partialorder %v434, 8.507059e+37
    %v436 = vand.u32 %v418, 2147483648
    %v437 = vor.u32 1.1754944e-38, %v436
    %v438 = vsel %vm435, %v437, %v433
    %v439 = vmul.f32 %v413, %v438
    %v440 = vrcp.pop %v420
    %v441 = vmul.f32 %v420, %v440
    %v442 = vsub.f32 1.0, %v441
    %v443 = vmul.f32 %v440, %v442
    %v444 = vadd.f32 %v440, %v443
    %vm445 = vweird.f32 %v420
    %vm446 = vweird.f32 %v440
    %vm447 = vmor %vm445, %vm446
    %v448 = vsel %vm447, %v440, %v444
    %v449 = vand.u32 2147483647, %v420
    %vm450 = vcmp.eq.f32.partialorder %v449, 8.507059e+37
    %v451 = vand.u32 %v420, 2147483648
    %v452 = vor.u32 1.1754944e-38, %v451
    %v453 = vsel %vm450, %v452, %v448
    %v454 = vmul.f32 %v414, %v453
    %v455 = vrcp.pop %v422
    %v456 = vmul.f32 %v422, %v455
    %v457 = vsub.f32 1.0, %v456
    %v458 = vmul.f32 %v455, %v457
    %v459 = vadd.f32 %v455, %v458
    %vm460 = vweird.f32 %v422
    %vm461 = vweird.f32 %v455
    %vm462 = vmor %vm460, %vm461
    %v463 = vsel %vm462, %v455, %v459
    %v464 = vand.u32 2147483647, %v422
    %vm465 = vcmp.eq.f32.partialorder %v464, 8.507059e+37
    %v466 = vand.u32 %v422, 2147483648
    %v467 = vor.u32 1.1754944e-38, %v466
    %v468 = vsel %vm465, %v467, %v463
    %v469 = vmul.f32 %v415, %v468
    %v470 = vrcp.pop %v424
    %v471 = vmul.f32 %v424, %v470
    %v472 = vsub.f32 1.0, %v471
    %v473 = vmul.f32 %v470, %v472
    %v474 = vadd.f32 %v470, %v473
    %vm475 = vweird.f32 %v424
    %vm476 = vweird.f32 %v470
    %vm477 = vmor %vm475, %vm476
    %v478 = vsel %vm477, %v470, %v474
    %v479 = vand.u32 2147483647, %v424
    %vm480 = vcmp.eq.f32.partialorder %v479, 8.507059e+37
    %v481 = vand.u32 %v424, 2147483648
    %v482 = vor.u32 1.1754944e-38, %v481
    %v483 = vsel %vm480, %v482, %v478
    %v484 = vmul.f32 %v416, %v483
    %485 = vst [vmem:[%s6] sm:$0xff] %v439
    %486 = vst [vmem:[%s6 + $0x8] sm:$0xff] %v454
    %487 = vst [vmem:[%s6 + $0x10] sm:$0xff] %v469
    %488 = vst [vmem:[%s6 + $0x18] sm:$0xff] %v484
    // Predicated region
    $region30: #{gnn_forward_fused.1} parent=1 // pred_check
      _
    $region31: #{gnn_forward_fused.1} parent=1 // pred_check_branch
      %490 = sbr.rel (0) target = $region33
    $region32: #{gnn_forward_fused.1} parent=1 // pred_region
      _
    $region33: #{gnn_forward_fused.1} parent=1 // pred_fallthru
      _
    // Predicated region
    $region34: #{gnn_forward_fused.1} parent=1 // pred_check
      _
    $region35: #{gnn_forward_fused.1} parent=1 // pred_check_branch
      %492 = sbr.rel (0) target = $region37
    $region36: #{gnn_forward_fused.1} parent=1 // pred_region
      _
    $region37: #{gnn_forward_fused.1} parent=1 // pred_fallthru
      _
    %493 = vsyncpa [#allocation3], 1

</llo_original>
